<compile_context>
chip_gen: v6e
topology: v6e:2x2x1
jax: 0.10.0
libtpu: 0.0.40
codegen_flags: <defaults>
</compile_context>

<pallas_src>
import functools

import jax
import jax.numpy as jnp
from jax import lax
from jax.experimental import pallas as pl
from jax.experimental.pallas import tpu as pltpu


def _tv_kernel(x_ref, o_ref, acc_ref, *, inv_numel):
    # x_ref:   (1, H, W) VMEM block — one channel of the patch.
    # o_ref:   (1, 1) f32 SMEM output (written once, on the last channel).
    # acc_ref: (1, 1) f32 VMEM scratch accumulator (persists across grid).
    c = pl.program_id(0)

    @pl.when(c == 0)
    def _init():
        acc_ref[...] = jnp.zeros_like(acc_ref)

    x = x_ref[0].astype(jnp.float32)  # (H, W); upcast (also covers bf16 inputs)
    H, W = x.shape

    # ---- W-direction (lane axis) differences -------------------------------
    # roll by W-1  ==  roll by -1:  nxt_w[h, w] = x[h, (w + 1) % W]
    nxt_w = pltpu.roll(x, shift=W - 1, axis=1)
    lane = lax.broadcasted_iota(jnp.int32, (H, W), 1)
    # +1e-6 inside abs() — matches the PyTorch reference (do not "fix").
    dr = jnp.where(lane < W - 1, jnp.abs(nxt_w - x + 1e-6), 0.0)
    part = jnp.sum(dr)  # reduce now, before building the next temporary

    # ---- H-direction (sublane axis) differences ----------------------------
    nxt_h = pltpu.roll(x, shift=H - 1, axis=0)  # nxt_h[h, w] = x[(h + 1) % H, w]
    sub = lax.broadcasted_iota(jnp.int32, (H, W), 0)
    dc = jnp.where(sub < H - 1, jnp.abs(nxt_h - x + 1e-6), 0.0)
    part = part + jnp.sum(dc)

    acc_ref[...] = acc_ref[...] + part

    @pl.when(c == pl.num_programs(0) - 1)
    def _finalize():
        # Scale on the vector side, extract a single scalar for the SMEM store.
        result = acc_ref[...] * inv_numel  # (1, 1) f32
        o_ref[0, 0] = result[0, 0]


def total_variation_loss(adv_patch: jax.Array) -> jax.Array:
    """Pallas TV loss. adv_patch: [C, H, W]. Returns a scalar f32."""
    C, H, W = adv_patch.shape
    inv_numel = 1.0 / float(C * H * W)

    kernel = functools.partial(_tv_kernel, inv_numel=inv_numel)

    out = pl.pallas_call(
        kernel,
        out_shape=jax.ShapeDtypeStruct((1, 1), jnp.float32),
        grid_spec=pltpu.PrefetchScalarGridSpec(
            num_scalar_prefetch=0,
            grid=(C,),
            in_specs=[pl.BlockSpec((1, H, W), lambda c: (c, 0, 0))],
            out_specs=pl.BlockSpec(memory_space=pltpu.MemorySpace.SMEM),
            scratch_shapes=[pltpu.VMEM((1, 1), jnp.float32)],
        ),
        compiler_params=pltpu.CompilerParams(
            # Output/accumulator is revisited across the channel axis, so it
            # must be sequential ("arbitrary").
            dimension_semantics=("arbitrary",),
        ),
    )(adv_patch)
    return out[0, 0]


def _reference(adv_patch: jax.Array) -> jax.Array:
    x = adv_patch.astype(jnp.float32)
    tvcomp_r = jnp.sum(jnp.abs(x[:, :, 1:] - x[:, :, :-1] + 1e-6))
    tvcomp_c = jnp.sum(jnp.abs(x[:, 1:, :] - x[:, :-1, :] + 1e-6))
    return (tvcomp_r + tvcomp_c) / x.size


if __name__ == "__main__":
    key = jax.random.PRNGKey(0)

    # Small patch consistent with the module's forward: [C, H, W].
    adv_patch = jax.random.uniform(key, (4, 16, 16), dtype=jnp.float32)
    tv = jax.block_until_ready(total_variation_loss(adv_patch))
    ref = jax.block_until_ready(_reference(adv_patch))
    assert jnp.allclose(tv, ref, rtol=1e-5, atol=1e-6), (tv, ref)

    # Second, non-square shape to exercise generic H/W handling.
    key2 = jax.random.PRNGKey(1)
    adv_patch2 = jax.random.uniform(key2, (3, 32, 48), dtype=jnp.float32)
    tv2 = jax.block_until_ready(total_variation_loss(adv_patch2))
    ref2 = jax.block_until_ready(_reference(adv_patch2))
    assert jnp.allclose(tv2, ref2, rtol=1e-5, atol=1e-6), (tv2, ref2)

    print("KERNEL_OK")
</pallas_src>

<mosaic_0001>
module attributes {stable_mosaic.version = 11 : i64} {
  func.func @_tv_kernel(%arg0: i32, %arg1: memref<1x16x16xf32, #tpu.memory_space<vmem>>, %arg2: memref<1x1xf32, #tpu.memory_space<smem>>, %arg3: memref<1x1xf32, #tpu.memory_space<vmem>>) attributes {dimension_semantics = [#tpu.dimension_semantics<arbitrary>], iteration_bounds = array<i64: 4>, scalar_prefetch = 0 : i64, scratch_operands = 1 : i64, tpu.core_type = #tpu.core_type<tc>, window_params = [{transform_indices = @transform_0, window_bounds = array<i64: 1, 16, 16>}, {transform_indices = @transform_1, window_bounds = array<i64: 1, 1>}]} {
    %c0_i32 = arith.constant 0 : i32
    %0 = arith.cmpi eq, %arg0, %c0_i32 : i32
    %1 = arith.extui %0 : i1 to i32
    %c0_i32_0 = arith.constant 0 : i32
    %2 = arith.cmpi ne, %1, %c0_i32_0 : i32
    scf.if %2 {
      %cst_16 = arith.constant 0.000000e+00 : f32
      %41 = vector.broadcast %cst_16 : f32 to vector<1x1xf32>
      %c0_17 = arith.constant 0 : index
      %c0_18 = arith.constant 0 : index
      %42 = vector.load %arg3[%c0_17, %c0_18] : memref<1x1xf32, #tpu.memory_space<vmem>>, vector<1x1xf32>
      tpu.vector_store %arg3[%c0_17, %c0_18], %41 {strides = array<i32>} : memref<1x1xf32, #tpu.memory_space<vmem>>, vector<1x1xf32>,
    } else {
    }
    %c0 = arith.constant 0 : index
    %c0_1 = arith.constant 0 : index
    %c0_2 = arith.constant 0 : index
    %3 = vector.load %arg1[%c0, %c0_1, %c0_2] : memref<1x16x16xf32, #tpu.memory_space<vmem>>, vector<1x16x16xf32>
    %4 = vector.shape_cast %3 : vector<1x16x16xf32> to vector<16x16xf32>
    %c15_i32 = arith.constant 15 : i32
    %5 = tpu.dynamic_rotate %4 by %c15_i32 dim 1 : vector<16x16xf32>, i32 -> vector<16x16xf32>
    %6 = tpu.iota {dimensions = array<i32: 1>} : vector<16x16xi32>
    %c15_i32_3 = arith.constant 15 : i32
    %7 = vector.broadcast %c15_i32_3 : i32 to vector<16x16xi32>
    %8 = arith.cmpi slt, %6, %7 : vector<16x16xi32>
    %9 = arith.subf %5, %4 : vector<16x16xf32>
    %cst = arith.constant 9.99999997E-7 : f32
    %10 = vector.broadcast %cst : f32 to vector<16x16xf32>
    %11 = arith.addf %9, %10 : vector<16x16xf32>
    %12 = math.absf %11 : vector<16x16xf32>
    %cst_4 = arith.constant 0.000000e+00 : f32
    %13 = vector.broadcast %cst_4 : f32 to vector<16x16xf32>
    %14 = arith.select %8, %12, %13 : vector<16x16xi1>, vector<16x16xf32>
    %15 = vector.shape_cast %14 : vector<16x16xf32> to vector<1x16x16xf32>
    %cst_5 = arith.constant dense<0.000000e+00> : vector<1xf32>
    %16 = vector.multi_reduction <add>, %15, %cst_5 [1, 2] : vector<1x16x16xf32> to vector<1xf32>
    %17 = vector.shape_cast %16 : vector<1xf32> to vector<1x1x1xf32>
    %18 = vector.extract %17[0, 0, 0] : f32 from vector<1x1x1xf32>
    %c15_i32_6 = arith.constant 15 : i32
    %19 = tpu.dynamic_rotate %4 by %c15_i32_6 dim 0 : vector<16x16xf32>, i32 -> vector<16x16xf32>
    %20 = tpu.iota {dimensions = array<i32: 0>} : vector<16x16xi32>
    %c15_i32_7 = arith.constant 15 : i32
    %21 = vector.broadcast %c15_i32_7 : i32 to vector<16x16xi32>
    %22 = arith.cmpi slt, %20, %21 : vector<16x16xi32>
    %23 = arith.subf %19, %4 : vector<16x16xf32>
    %cst_8 = arith.constant 9.99999997E-7 : f32
    %24 = vector.broadcast %cst_8 : f32 to vector<16x16xf32>
    %25 = arith.addf %23, %24 : vector<16x16xf32>
    %26 = math.absf %25 : vector<16x16xf32>
    %cst_9 = arith.constant 0.000000e+00 : f32
    %27 = vector.broadcast %cst_9 : f32 to vector<16x16xf32>
    %28 = arith.select %22, %26, %27 : vector<16x16xi1>, vector<16x16xf32>
    %29 = vector.shape_cast %28 : vector<16x16xf32> to vector<1x16x16xf32>
    %cst_10 = arith.constant dense<0.000000e+00> : vector<1xf32>
    %30 = vector.multi_reduction <add>, %29, %cst_10 [1, 2] : vector<1x16x16xf32> to vector<1xf32>
    %31 = vector.shape_cast %30 : vector<1xf32> to vector<1x1x1xf32>
    %32 = vector.extract %31[0, 0, 0] : f32 from vector<1x1x1xf32>
    %33 = arith.addf %18, %32 : f32
    %c0_11 = arith.constant 0 : index
    %c0_12 = arith.constant 0 : index
    %34 = vector.load %arg3[%c0_11, %c0_12] : memref<1x1xf32, #tpu.memory_space<vmem>>, vector<1x1xf32>
    %35 = vector.broadcast %33 : f32 to vector<1x1xf32>
    %36 = arith.addf %34, %35 : vector<1x1xf32>
    %c0_13 = arith.constant 0 : index
    %c0_14 = arith.constant 0 : index
    %37 = vector.load %arg3[%c0_13, %c0_14] : memref<1x1xf32, #tpu.memory_space<vmem>>, vector<1x1xf32>
    tpu.vector_store %arg3[%c0_13, %c0_14], %36 {strides = array<i32>} : memref<1x1xf32, #tpu.memory_space<vmem>>, vector<1x1xf32>,
    %c3_i32 = arith.constant 3 : i32
    %38 = arith.cmpi eq, %arg0, %c3_i32 : i32
    %39 = arith.extui %38 : i1 to i32
    %c0_i32_15 = arith.constant 0 : i32
    %40 = arith.cmpi ne, %39, %c0_i32_15 : i32
    scf.if %40 {
      %c0_16 = arith.constant 0 : index
      %c0_17 = arith.constant 0 : index
      %41 = vector.load %arg3[%c0_16, %c0_17] : memref<1x1xf32, #tpu.memory_space<vmem>>, vector<1x1xf32>
      %cst_18 = arith.constant 9.765625E-4 : f32
      %42 = vector.broadcast %cst_18 : f32 to vector<1x1xf32>
      %43 = arith.mulf %41, %42 : vector<1x1xf32>
      %44 = vector.extract %43[0, 0] : f32 from vector<1x1xf32>
      %c0_19 = arith.constant 0 : index
      %c0_20 = arith.constant 0 : index
      %45 = memref.load %arg2[%c0_19, %c0_20] : memref<1x1xf32, #tpu.memory_space<smem>>
      memref.store %44, %arg2[%c0_19, %c0_20] : memref<1x1xf32, #tpu.memory_space<smem>>
    } else {
    }
    return
  }
  func.func @transform_0(%arg0: i32) -> (i32, i32, i32) {
    %c0_i32 = arith.constant 0 : i32
    %c0_i32_0 = arith.constant 0 : i32
    %c0_i32_1 = arith.constant 0 : i32
    return %arg0, %c0_i32, %c0_i32_0 : i32, i32, i32
  }
  func.func @transform_1(%arg0: i32) -> (i32, i32) {
    %c0_i32 = arith.constant 0 : i32
    %c0_i32_0 = arith.constant 0 : i32
    %c0_i32_1 = arith.constant 0 : i32
    return %c0_i32, %c0_i32_0 : i32, i32
  }
}

</mosaic_0001>

<llo_original>
// kernel: tpu_custom_call.1
$region0: #{tpu_custom_call.1}
  #allocation0 [shape = 'u32[]', space=smem, size = 0x4, offset = 0x4, fixed_abs, tag = 'smem constant byte address 0x4 - core index']
  #allocation1 [shape = 'u32[144,128]{1,0:T(1,128)}', space=vmem, size = 0x12000, scoped, tag = 'internal scratch']
  #allocation2 [shape = 'f32[1,1]{1,0:T(1,128)}', space=vmem, size = 0x200, scoped, tag = 'scratch operand']
  %s0 = inlined_call_operand.hbm [shape: f32[4,16,16], index: 0, kind: input, shape index: {}]
  %s1 = inlined_call_operand.hbm [shape: f32[1,1], index: 1, kind: output, shape index: {}]
  %s2 = sld [smem:[#allocation0]]
  $region49: #{tpu_custom_call.1} parent=0
    _
  %s4 = ssub.s32 1, %s2
  %s5 = scalar_select 0, %s4, %s2
  $region1: #{tpu_custom_call.1} parent=0
    #allocation3 [shape = 'u8[16384]{0}', space=vmem, size = 0x4000, scoped, tag = 'input window, operand 0']
    #allocation4 [shape = 's32[2]{0}', space=sflag, size = 0x8, scoped, tag = 'scoped memory for tpu_custom_call.1']
    #allocation5 [shape = 's32[2]{0}', space=sflag, size = 0x8, scoped, tag = 'scoped memory for tpu_custom_call.1']
    #allocation6 [shape = 'u8[512]{0}', space=smem, size = 0x200, scoped, tag = 'output window, operand 0, single buffered']
    %6 = vsyncpa [#allocation4], 0
    %s7 = scalar_lea.sflag [#allocation4], 1
    %8 = vsyncpa %s7, 0
    %9 = vsyncpa [#allocation5], 0
    loop: start=0, step=1, limit=6
    $region2: #{tpu_custom_call.1} parent=1 // loop_pre_header
      _
    $region3: #{tpu_custom_call.1} parent=1 // loop_header
      %s11 = sphi 0, %s15
      %p12 = scmp.ge.s32.totalorder %s11, 6
      %s21 = sphi 0, %s23
      %s24 = sphi 0, %s21
      %s25 = sphi 0, %s24
      %s41 = sphi 0, %s25
      %s45 = sphi 0, %s45
      %s47 = sphi 0, %s45
      %s48 = sphi 0, %s47
      %s62 = sphi 0, %s48
    $region4: #{tpu_custom_call.1} parent=1 // loop_header_branch
      %14 = sbr.rel (%p12) target = $region8
    $region5: #{tpu_custom_call.1} parent=1 // loop_body
      %s16 = ssub.s32 %s11, 1
      %s17 = ssub.s32 %s11, 2
      %s18 = sadd.s32 %s11, 1
      %s19 = ssub.s32 %s11, %s18
      %p20 = scmp.eq.s32.totalorder %s19, 0
      %s22 = sadd.s32 %s21, 1
      %s23 = scalar_select %p20, %s21, %s22
      %p26 = pneg %p20
      %p27 = scmp.eq.s32.totalorder %s11, 3
      %p28 = por %p26, %p27
      %p29 = scmp.ne.s32.totalorder %s21, %s24
      %p30 = scmp.eq.s32.totalorder %s11, 0
      %p31 = por %p29, %p30
      %p32 = scmp.ne.s32.totalorder %s21, %s24
      %p33 = scmp.eq.s32.totalorder %s16, 3
      %p34 = por %p32, %p33
      %p35 = scmp.ne.s32.totalorder %s24, %s25
      %p36 = scmp.eq.s32.totalorder %s16, 0
      %p37 = por %p35, %p36
      %p38 = scmp.ne.s32.totalorder %s24, %s25
      %p39 = scmp.eq.s32.totalorder %s17, 3
      %p40 = por %p38, %p39
      %p42 = scmp.ne.s32.totalorder %s25, %s41
      %p43 = scmp.eq.s32.totalorder %s17, 0
      %p44 = por %p42, %p43
      %s46 = sadd.s32 %s45, 1
      %p49 = scmp.eq.s32.totalorder %s11, 3
      %p50 = scmp.ne.s32.totalorder %s45, %s47
      %p51 = scmp.eq.s32.totalorder %s11, 0
      %p52 = por %p50, %p51
      %p53 = scmp.ne.s32.totalorder %s45, %s47
      %p54 = scmp.eq.s32.totalorder %s16, 3
      %p55 = por %p53, %p54
      %p56 = scmp.ne.s32.totalorder %s47, %s48
      %p57 = scmp.eq.s32.totalorder %s16, 0
      %p58 = por %p56, %p57
      %p59 = scmp.ne.s32.totalorder %s47, %s48
      %p60 = scmp.eq.s32.totalorder %s17, 3
      %p61 = por %p59, %p60
      %p63 = scmp.ne.s32.totalorder %s48, %s62
      %p64 = scmp.eq.s32.totalorder %s17, 0
      %p65 = por %p63, %p64
      %p66 = scmp.le.s32.totalorder 1, %s11
      %p67 = scmp.lt.s32.totalorder %s11, 5
      %p68 = pnand %p66, %p67
      %p69 = pneg %p68
      // Predicated region
      $region9: #{tpu_custom_call.1} parent=5 // pred_check
        _
      $region10: #{tpu_custom_call.1} parent=5 // pred_check_branch
        %71 = sbr.rel (%p68) target = $region12
      $region11: #{tpu_custom_call.1} parent=5 // pred_region
        %s72 = ssub.s32 %s11, 1
      $region12: #{tpu_custom_call.1} parent=5 // pred_fallthru
        _
      %p73 = scmp.lt.s32.totalorder %s11, 4
      // Predicated region
      $region13: #{tpu_custom_call.1} parent=5 // pred_check
        %p74 = pneg %p73
      $region14: #{tpu_custom_call.1} parent=5 // pred_check_branch
        %76 = sbr.rel (%p74) target = $region16
      $region15: #{tpu_custom_call.1} parent=5 // pred_region
        // Predicated region
        $region17: #{tpu_custom_call.1} parent=15 // pred_check
          %p77 = pneg %p31
        $region18: #{tpu_custom_call.1} parent=15 // pred_check_branch
          %79 = sbr.rel (%p77) target = $region20
        $region19: #{tpu_custom_call.1} parent=15 // pred_region
          %s80 = sand.u32 %s21, 1
          %s81 = scalar_lea.sflag [#allocation4], %s80
          %s82 = sand.u32 %s21, 1
          %s83 = smul.addr %s82, 16
          %s84 = scalar_lea.vmem [#allocation3], %s83
          %s86 = ssub.s32 256, 256
          %87 = vsyncadd %s81, %s86
          %s88 = smul.addr %s11, 2
          %s89 = smul.addr %s88, 128
          %s90 = scalar_lea.hbm %s0, %s89
          %s91 = sshll.u32 %s84, 4
          %s92 = int_to_ptr.vmem [resolvable:$true] %s91
          %97 = dma.hbm_to_vmem [thread:$0]  %s90, 256, %s92, %s81, 128, 128, 8
        $region20: #{tpu_custom_call.1} parent=15 // pred_fallthru
          _
      $region16: #{tpu_custom_call.1} parent=5 // pred_fallthru
        _
      %p98 = scmp.le.s32.totalorder 1, %s11
      %p99 = scmp.lt.s32.totalorder %s11, 5
      %p100 = pnand %p98, %p99
      %p101 = pneg %p100
      // Predicated region
      $region21: #{tpu_custom_call.1} parent=5 // pred_check
        _
      $region22: #{tpu_custom_call.1} parent=5 // pred_check_branch
        %103 = sbr.rel (%p100) target = $region24
      $region23: #{tpu_custom_call.1} parent=5 // pred_region
        %s104 = ssub.s32 %s11, 1
        %s105 = sand.u32 %s24, 1
        %s106 = scalar_lea.sflag [#allocation4], %s105
        %s107 = sand.u32 %s24, 1
        %s108 = smul.addr %s107, 16
        %s109 = scalar_lea.vmem [#allocation3], %s108
        // Predicated region
        $region25: #{tpu_custom_call.1} parent=23 // pred_check
          %p110 = pneg %p37
        $region26: #{tpu_custom_call.1} parent=23 // pred_check_branch
          %112 = sbr.rel (%p110) target = $region28
        $region27: #{tpu_custom_call.1} parent=23 // pred_region
          %113 = dma.done %s106, 256
        $region28: #{tpu_custom_call.1} parent=23 // pred_fallthru
          _
        %s114 = sand.u32 %s24, 1
        %s115 = scalar_lea.sflag [#allocation4], %s114
        %s116 = sand.u32 %s24, 1
        %s117 = smul.addr %s116, 16
        %s118 = scalar_lea.vmem [#allocation3], %s117
        %p119 = pneg %p37
        %p120 = pneg %p34
        %p121 = pneg %p58
        %p122 = pneg %p55
        %p123 = scmp.eq.s32.totalorder %s16, 0
        // Predicated region
        $region29: #{tpu_custom_call.1} parent=23 // pred_check
          %p124 = pneg %p123
        $region30: #{tpu_custom_call.1} parent=23 // pred_check_branch
          %126 = sbr.rel (%p124) target = $region32
        $region31: #{tpu_custom_call.1} parent=23 // pred_region
          %vm127 = vcmask 0
          %128 = vst.msk [vmem:[#allocation2] sm:$0x1] %vm127, 0.0
        $region32: #{tpu_custom_call.1} parent=23 // pred_fallthru
          _
        %v129 = vld [vmem:[%s109] sm:$0xff]
        %v130 = vld [vmem:[%s109 + $0x8] sm:$0xff]
        %vm131 = vcmask 1047680
        %132 = vrot.lane.b32.xlu0 %v129, 16
        %v133 = vpop.permute.xlu0 %132
        %v134 = vsel %vm131, %v133, %v129
        %135 = vrot.lane.b32.xlu0 %v130, 16
        %v136 = vpop.permute.xlu0 %135
        %v137 = vsel %vm131, %v136, %v130
        %138 = vrot.lane.b32.xlu0 %v134, 16
        %v139 = vpop.permute.xlu0 %138
        %140 = vrot.lane.b32.xlu0 %v137, 16
        %v141 = vpop.permute.xlu0 %140
        %v142 = vsel %vm131, %v139, %v129
        %v143 = vsel %vm131, %v141, %v130
        %v144 = vlaneseq
        %v145 = vand.u32 %v144, 127
        %vm146 = vcmp.lt.s32.totalorder %v145, 15
        %149 = vrot.lane.b32.xlu0 %v129, 1
        %v150 = vpop.permute.xlu0 %149
        %151 = vrot.lane.b32.xlu0 %v130, 1
        %v152 = vpop.permute.xlu0 %151
        %v155 = vsub.f32 %v142, %v150
        %v156 = vsub.f32 %v143, %v152
        %v157 = vadd.f32 %v155, 1e-06
        %v158 = vadd.f32 %v156, 1e-06
        %v159 = vand.u32 2147483647, %v157
        %v160 = vand.u32 2147483647, %v158
        %163 = vrot.lane.b32.xlu0 %v159, 127
        %v164 = vpop.permute.xlu0 %163
        %165 = vrot.lane.b32.xlu0 %v160, 127
        %v166 = vpop.permute.xlu0 %165
        %v169 = vsel %vm146, %v164, 0.0
        %v170 = vsel %vm146, %v166, 0.0
        %vm171 = vcmask 130048
        %v172 = vsel %vm171, %v169, 0.0
        %v173 = vsel %vm171, %v170, 0.0
        %v174 = vadd.f32 %v172, %v173
        %175 = vadd.xlane.f32.xlu0 %v174
        %v176 = vpop.xlane.xlu0 %175
        %v177 = vrot.slane %v176, 4
        %v178 = vadd.f32 %v176, %v177
        %v179 = vrot.slane %v178, 2
        %v180 = vadd.f32 %v178, %v179
        %v181 = vrot.slane %v180, 1
        %v182 = vadd.f32 %v180, %v181
        %s183 = vtos %v182
        %v184 = vrot.slane %v129, 1
        %v185 = vrot.slane %v130, 1
        %v186 = vlaneseq
        %v187 = vshrl.u32 %v186, 7
        %vm188 = vcmp.lt.s32.totalorder %v187, 7
        %v189 = vsel %vm188, %v184, %v185
        %v190 = vsel %vm188, %v185, %v184
        %v191 = vadd.s32 %v187, 8
        %vm192 = vcmp.lt.s32.totalorder %v187, 15
        %vm193 = vcmp.lt.s32.totalorder %v191, 15
        %v194 = vsub.f32 %v189, %v129
        %v195 = vsub.f32 %v190, %v130
        %v196 = vadd.f32 %v194, 1e-06
        %v197 = vadd.f32 %v195, 1e-06
        %v198 = vand.u32 2147483647, %v196
        %v199 = vand.u32 2147483647, %v197
        %v200 = vsel %vm192, %v198, 0.0
        %v201 = vsel %vm193, %v199, 0.0
        %v202 = vsel %vm171, %v200, 0.0
        %v203 = vsel %vm171, %v201, 0.0
        %v204 = vadd.f32 %v202, %v203
        %205 = vadd.xlane.f32.xlu0 %v204
        %v206 = vpop.xlane.xlu0 %205
        %v207 = vrot.slane %v206, 4
        %v208 = vadd.f32 %v206, %v207
        %v209 = vrot.slane %v208, 2
        %v210 = vadd.f32 %v208, %v209
        %v211 = vrot.slane %v210, 1
        %v212 = vadd.f32 %v210, %v211
        %s213 = vtos %v212
        %s214 = sadd.f32 %s183, %s213
        %v215 = vld [vmem:[#allocation2] sm:$0x1]
        %v216 = vstv %s214
        %v217 = vadd.f32 %v215, %v216
        %vm218 = vcmask 0
        %219 = vst.msk [vmem:[#allocation2] sm:$0x1] %vm218, %v217
        %p220 = scmp.eq.s32.totalorder %s16, 3
        // Predicated region
        $region33: #{tpu_custom_call.1} parent=23 // pred_check
          %p221 = pneg %p220
        $region34: #{tpu_custom_call.1} parent=23 // pred_check_branch
          %223 = sbr.rel (%p221) target = $region36
        $region35: #{tpu_custom_call.1} parent=23 // pred_region
          %v224 = vld [vmem:[#allocation2] sm:$0x1]
          %v225 = vmul.f32 %v224, 0.0009765625
          %s226 = vtos %v225
          %s227 = scalar_lea.smem [#allocation6], 0
          %228 = sst [smem:[%s227]] %s226
        $region36: #{tpu_custom_call.1} parent=23 // pred_fallthru
          _
        // Predicated region
        $region37: #{tpu_custom_call.1} parent=23 // pred_check
          %p229 = pneg %p55
        $region38: #{tpu_custom_call.1} parent=23 // pred_check_branch
          %231 = sbr.rel (%p229) target = $region40
        $region39: #{tpu_custom_call.1} parent=23 // pred_region
          %s233 = ssub.s32 16, 16
          %234 = vsyncadd [#allocation5], %s233
          %237 = dma.smem_to_hbm [#allocation6], 16, %s1, [#allocation5]
        $region40: #{tpu_custom_call.1} parent=23 // pred_fallthru
          _
        // Predicated region
        $region41: #{tpu_custom_call.1} parent=23 // pred_check
          %p238 = pneg %p55
        $region42: #{tpu_custom_call.1} parent=23 // pred_check_branch
          %240 = sbr.rel (%p238) target = $region44
        $region43: #{tpu_custom_call.1} parent=23 // pred_region
          %241 = dma.done [#allocation5], 16
        $region44: #{tpu_custom_call.1} parent=23 // pred_fallthru
          _
        %242 = sfence
      $region24: #{tpu_custom_call.1} parent=5 // pred_fallthru
        _
      %p243 = scmp.le.s32.totalorder 2, %s11
      // Predicated region
      $region45: #{tpu_custom_call.1} parent=5 // pred_check
        %p244 = pneg %p243
      $region46: #{tpu_custom_call.1} parent=5 // pred_check_branch
        %246 = sbr.rel (%p244) target = $region48
      $region47: #{tpu_custom_call.1} parent=5 // pred_region
        %s247 = ssub.s32 %s11, 2
      $region48: #{tpu_custom_call.1} parent=5 // pred_fallthru
        _
    $region6: #{tpu_custom_call.1} parent=1 // loop_footer
      %s15 = sadd.s32 1, %s11
    $region7: #{tpu_custom_call.1} parent=1 // loop_footer_branch
      %10 = sbr.rel target = $region3
    $region8: #{tpu_custom_call.1} parent=1 // loop_exit
      _
    %248 = vsyncpa [#allocation4], 1
    %s249 = scalar_lea.sflag [#allocation4], 1
    %250 = vsyncpa %s249, 1
    %251 = vsyncpa [#allocation5], 1
    %s252 = scalar_lea.sflag [#allocation5], 1
    %253 = vsyncpa %s252, 1

</llo_original>
